<compile_context>
chip_gen: v7x
topology: tpu7x:2x2x1
jax: 0.10.0
libtpu: 0.0.40
codegen_flags: <defaults>
</compile_context>

<pallas_src>
import functools

import jax
import jax.numpy as jnp
from jax.experimental import pallas as pl
from jax.experimental.pallas import tpu as pltpu


def _idm_kernel(obs_ref, next_ref, w1_ref, b1_ref, w2_ref, b2_ref, o_ref,
                *, latent_dim):
    # First layer as two MXU dots summing into one f32 accumulator
    # (equivalent to concat([obs, next_obs]) @ W1, without the concat).
    h = jnp.dot(obs_ref[...], w1_ref[:latent_dim, :],
                preferred_element_type=jnp.float32)
    h = h + jnp.dot(next_ref[...], w1_ref[latent_dim:, :],
                    preferred_element_type=jnp.float32)
    h = jnp.maximum(h + b1_ref[...], 0.0)                     # bias + ReLU, f32
    out = jnp.dot(h, w2_ref[...],
                  preferred_element_type=jnp.float32) + b2_ref[...]
    o_ref[...] = out.astype(o_ref.dtype)


def _cost_estimate(batch, latent_dim, hidden, out_cols):
    flops = 2 * batch * (2 * latent_dim * hidden + hidden * out_cols)
    bytes_accessed = 4 * (batch * 2 * latent_dim           # obs + next_obs
                          + 2 * latent_dim * hidden + hidden   # W1 + b1
                          + hidden * out_cols + out_cols       # W2 + b2
                          + batch * out_cols)                  # output
    return pl.CostEstimate(flops=flops, transcendentals=0,
                           bytes_accessed=bytes_accessed)


def inverse_dynamics_forward(obs, next_obs, w1, b1, w2, b2, *, batch_tile=128):
    """obs, next_obs: (B, latent_dim) f32. w1: (2L, 256), b1: (1, 256),
    w2: (256, action_dim), b2: (1, action_dim). Returns (B, action_dim) f32."""
    B, L = obs.shape
    hidden = w1.shape[1]
    action_dim = w2.shape[1]

    # Lane-pad the output feature axis to a multiple of 128 (unmasked stores,
    # full MXU result rows). Zero columns cost nothing and are sliced off below.
    n_pad = -action_dim % 128
    if n_pad:
        w2p = jnp.pad(w2, ((0, 0), (0, n_pad)))
        b2p = jnp.pad(b2, ((0, 0), (0, n_pad)))
    else:
        w2p, b2p = w2, b2
    n_cols = action_dim + n_pad

    kernel = functools.partial(_idm_kernel, latent_dim=L)

    if B <= batch_tile:
        # Single block per array, no grid -> no pipeline/loop scaffolding.
        out = pl.pallas_call(
            kernel,
            out_shape=jax.ShapeDtypeStruct((B, n_cols), jnp.float32),
            cost_estimate=_cost_estimate(B, L, hidden, n_cols),
        )(obs, next_obs, w1, b1, w2p, b2p)
        return out[:, :action_dim]

    # Large-batch path: tile over B; weights stay VMEM-resident across steps.
    b_pad = -B % batch_tile
    if b_pad:
        obs_p = jnp.pad(obs, ((0, b_pad), (0, 0)))
        next_p = jnp.pad(next_obs, ((0, b_pad), (0, 0)))
    else:
        obs_p, next_p = obs, next_obs
    Bp = B + b_pad

    out = pl.pallas_call(
        kernel,
        out_shape=jax.ShapeDtypeStruct((Bp, n_cols), jnp.float32),
        grid=(Bp // batch_tile,),
        in_specs=[
            pl.BlockSpec((batch_tile, L), lambda i: (i, 0)),
            pl.BlockSpec((batch_tile, L), lambda i: (i, 0)),
            pl.BlockSpec(w1.shape, lambda i: (0, 0)),
            pl.BlockSpec(b1.shape, lambda i: (0, 0)),
            pl.BlockSpec((hidden, n_cols), lambda i: (0, 0)),
            pl.BlockSpec((1, n_cols), lambda i: (0, 0)),
        ],
        out_specs=pl.BlockSpec((batch_tile, n_cols), lambda i: (i, 0)),
        compiler_params=pltpu.CompilerParams(
            dimension_semantics=("parallel",)),
        cost_estimate=_cost_estimate(Bp, L, hidden, n_cols),
    )(obs_p, next_p, w1, b1, w2p, b2p)
    return out[:B, :action_dim]


def init_params(key, latent_dim, action_dim, hidden=256):
    """Deterministic parameter init (PyTorch-Linear-like uniform ranges).
    Weights stored as (in_features, out_features) so x @ W + b matches
    PyTorch's x @ W.T + b."""
    k1, k2, k3, k4 = jax.random.split(key, 4)
    in1 = 2 * latent_dim
    bound1 = 1.0 / jnp.sqrt(in1)
    bound2 = 1.0 / jnp.sqrt(hidden)
    w1 = jax.random.uniform(k1, (in1, hidden), jnp.float32, -bound1, bound1)
    b1 = jax.random.uniform(k2, (1, hidden), jnp.float32, -bound1, bound1)
    w2 = jax.random.uniform(k3, (hidden, action_dim), jnp.float32, -bound2, bound2)
    b2 = jax.random.uniform(k4, (1, action_dim), jnp.float32, -bound2, bound2)
    return w1, b1, w2, b2


def _reference(obs, next_obs, w1, b1, w2, b2):
    x = jnp.concatenate([obs, next_obs], axis=1)
    return jnp.maximum(x @ w1 + b1, 0.0) @ w2 + b2


if __name__ == "__main__":
    latent_dim = 32
    action_dim = 8
    batch = 8

    key = jax.random.PRNGKey(0)
    k_obs, k_next, k_param = jax.random.split(key, 3)

    obs = jax.random.normal(k_obs, (batch, latent_dim), jnp.float32)
    next_obs = jax.random.normal(k_next, (batch, latent_dim), jnp.float32)
    w1, b1, w2, b2 = init_params(k_param, latent_dim, action_dim)

    # Small-batch (gridless) path.
    out = inverse_dynamics_forward(obs, next_obs, w1, b1, w2, b2)
    out = jax.block_until_ready(out)
    ref = _reference(obs, next_obs, w1, b1, w2, b2)
    assert out.shape == (batch, action_dim)
    assert jnp.allclose(out, ref, atol=1e-5, rtol=1e-5)

    # Large-batch (tiled, megacore-parallel) path — uneven B exercises padding.
    big_batch = 160
    k_obs2, k_next2 = jax.random.split(jax.random.PRNGKey(1), 2)
    obs_big = jax.random.normal(k_obs2, (big_batch, latent_dim), jnp.float32)
    next_big = jax.random.normal(k_next2, (big_batch, latent_dim), jnp.float32)
    out_big = inverse_dynamics_forward(obs_big, next_big, w1, b1, w2, b2)
    out_big = jax.block_until_ready(out_big)
    ref_big = _reference(obs_big, next_big, w1, b1, w2, b2)
    assert out_big.shape == (big_batch, action_dim)
    assert jnp.allclose(out_big, ref_big, atol=1e-5, rtol=1e-5)

    print("KERNEL_OK")
</pallas_src>

<mosaic_0001>
module attributes {stable_mosaic.version = 11 : i64} {
  func.func @_idm_kernel(%arg0: memref<8x32xf32, #tpu.memory_space<vmem>>, %arg1: memref<8x32xf32, #tpu.memory_space<vmem>>, %arg2: memref<64x256xf32, #tpu.memory_space<vmem>>, %arg3: memref<1x256xf32, #tpu.memory_space<vmem>>, %arg4: memref<256x128xf32, #tpu.memory_space<vmem>>, %arg5: memref<1x128xf32, #tpu.memory_space<vmem>>, %arg6: memref<8x128xf32, #tpu.memory_space<vmem>>) attributes {dimension_semantics = [], scalar_prefetch = 0 : i64, scratch_operands = 0 : i64, tpu.core_type = #tpu.core_type<tc>} {
    %c0 = arith.constant 0 : index
    %c0_0 = arith.constant 0 : index
    %0 = vector.load %arg0[%c0, %c0_0] : memref<8x32xf32, #tpu.memory_space<vmem>>, vector<8x32xf32>
    %c0_1 = arith.constant 0 : index
    %c0_2 = arith.constant 0 : index
    %1 = vector.load %arg2[%c0_1, %c0_2] : memref<64x256xf32, #tpu.memory_space<vmem>>, vector<32x256xf32>
    %cst = arith.constant dense<0.000000e+00> : vector<8x256xf32>
    %2 = tpu.matmul %0, %1, %cst {dimension_numbers = #tpu.dot_dimension_numbers<[1], [0], [0], [1], [0, 0, 1, 1], [], []>} : vector<8x32xf32>, vector<32x256xf32>, vector<8x256xf32> -> vector<8x256xf32>
    %c0_3 = arith.constant 0 : index
    %c0_4 = arith.constant 0 : index
    %3 = vector.load %arg1[%c0_3, %c0_4] : memref<8x32xf32, #tpu.memory_space<vmem>>, vector<8x32xf32>
    %c32 = arith.constant 32 : index
    %c0_5 = arith.constant 0 : index
    %4 = vector.load %arg2[%c32, %c0_5] : memref<64x256xf32, #tpu.memory_space<vmem>>, vector<32x256xf32>
    %cst_6 = arith.constant dense<0.000000e+00> : vector<8x256xf32>
    %5 = tpu.matmul %3, %4, %cst_6 {dimension_numbers = #tpu.dot_dimension_numbers<[1], [0], [0], [1], [0, 0, 1, 1], [], []>} : vector<8x32xf32>, vector<32x256xf32>, vector<8x256xf32> -> vector<8x256xf32>
    %6 = arith.addf %2, %5 : vector<8x256xf32>
    %c0_7 = arith.constant 0 : index
    %c0_8 = arith.constant 0 : index
    %7 = vector.load %arg3[%c0_7, %c0_8] : memref<1x256xf32, #tpu.memory_space<vmem>>, vector<1x256xf32>
    %8 = vector.broadcast %7 : vector<1x256xf32> to vector<8x256xf32>
    %9 = arith.addf %6, %8 : vector<8x256xf32>
    %cst_9 = arith.constant 0.000000e+00 : f32
    %10 = vector.broadcast %cst_9 : f32 to vector<8x256xf32>
    %11 = arith.maximumf %9, %10 : vector<8x256xf32>
    %c0_10 = arith.constant 0 : index
    %c0_11 = arith.constant 0 : index
    %12 = vector.load %arg4[%c0_10, %c0_11] : memref<256x128xf32, #tpu.memory_space<vmem>>, vector<256x128xf32>
    %cst_12 = arith.constant dense<0.000000e+00> : vector<8x128xf32>
    %13 = tpu.matmul %11, %12, %cst_12 {dimension_numbers = #tpu.dot_dimension_numbers<[1], [0], [0], [1], [0, 0, 1, 1], [], []>} : vector<8x256xf32>, vector<256x128xf32>, vector<8x128xf32> -> vector<8x128xf32>
    %c0_13 = arith.constant 0 : index
    %c0_14 = arith.constant 0 : index
    %14 = vector.load %arg5[%c0_13, %c0_14] : memref<1x128xf32, #tpu.memory_space<vmem>>, vector<1x128xf32>
    %15 = vector.broadcast %14 : vector<1x128xf32> to vector<8x128xf32>
    %16 = arith.addf %13, %15 : vector<8x128xf32>
    %c0_15 = arith.constant 0 : index
    %c0_16 = arith.constant 0 : index
    %17 = vector.load %arg6[%c0_15, %c0_16] : memref<8x128xf32, #tpu.memory_space<vmem>>, vector<8x128xf32>
    tpu.vector_store %arg6[%c0_15, %c0_16], %16 {strides = array<i32>} : memref<8x128xf32, #tpu.memory_space<vmem>>, vector<8x128xf32>,
    return
  }
}

</mosaic_0001>

<llo_original>
// kernel: tpu_custom_call.1
$region0: #{tpu_custom_call.1}
  #allocation0 [shape = 'u32[]', space=smem, size = 0x4, offset = 0x4, fixed_abs, tag = 'smem constant byte address 0x4 - core index']
  #allocation1 [shape = 'u32[144,128]{1,0:T(1,128)}', space=vmem, size = 0x12000, scoped, tag = 'internal scratch']
  %s0 = inlined_call_operand.hbm [shape: f32[8,32], index: 0, kind: input, shape index: {}]
  %s1 = inlined_call_operand.hbm [shape: f32[8,32], index: 1, kind: input, shape index: {}]
  %s2 = inlined_call_operand.hbm [shape: f32[64,256], index: 2, kind: input, shape index: {}]
  %s3 = inlined_call_operand.vmem [shape: f32[1,256], index: 3, kind: input, shape index: {}]
  %s4 = inlined_call_operand.hbm [shape: f32[256,128], index: 4, kind: input, shape index: {}]
  %s5 = inlined_call_operand.vmem [shape: f32[1,128], index: 5, kind: input, shape index: {}]
  %s6 = inlined_call_operand.hbm [shape: f32[8,128], index: 6, kind: output, shape index: {}]
  %s7 = sld [smem:[#allocation0]]
  $region50: #{tpu_custom_call.1} parent=0
    _
  %s9 = ssub.s32 1, %s7
  %s10 = scalar_select 0, %s9, %s7
  $region1: #{tpu_custom_call.1} parent=0
    #allocation2 [shape = 'u8[4096]{0}', space=vmem, size = 0x1000, scoped, tag = 'input window, operand 0, single buffered']
    #allocation3 [shape = 's32[1]{0}', space=sflag, size = 0x4, scoped, tag = 'scoped memory for tpu_custom_call.1']
    #allocation4 [shape = 's32[1]{0}', space=sflag, size = 0x4, scoped, tag = 'scoped memory for tpu_custom_call.1']
    #allocation5 [shape = 'u8[4096]{0}', space=vmem, size = 0x1000, scoped, tag = 'input window, operand 1, single buffered']
    #allocation6 [shape = 's32[1]{0}', space=sflag, size = 0x4, scoped, tag = 'scoped memory for tpu_custom_call.1']
    #allocation7 [shape = 'u8[65536]{0}', space=vmem, size = 0x10000, scoped, tag = 'input window, operand 2, single buffered']
    #allocation8 [shape = 'u8[131072]{0}', space=vmem, size = 0x20000, scoped, tag = 'input window, operand 4, single buffered']
    #allocation9 [shape = 's32[1]{0}', space=sflag, size = 0x4, scoped, tag = 'scoped memory for tpu_custom_call.1']
    #allocation10 [shape = 'u8[4096]{0}', space=vmem, size = 0x1000, scoped, tag = 'output window, operand 0, single buffered']
    %11 = vsyncpa [#allocation3], 0
    %12 = vsyncpa [#allocation6], 0
    %13 = vsyncpa [#allocation9], 0
    %14 = vsyncpa [#allocation4], 0
    // Predicated region
    $region2: #{tpu_custom_call.1} parent=1 // pred_check
      _
    $region3: #{tpu_custom_call.1} parent=1 // pred_check_branch
      %16 = sbr.rel (0) target = $region5
    $region4: #{tpu_custom_call.1} parent=1 // pred_region
      %s18 = ssub.s32 128, 128
      %19 = vsyncadd [#allocation3], %s18
      %s21 = sshll.u32 [#allocation2], 4
      %s22 = int_to_ptr.vmem [resolvable:$true] %s21
      %24 = dma.hbm_to_vmem [thread:$0]  %s0, 128, %s22, [#allocation3]
    $region5: #{tpu_custom_call.1} parent=1 // pred_fallthru
      _
    // Predicated region
    $region6: #{tpu_custom_call.1} parent=1 // pred_check
      _
    $region7: #{tpu_custom_call.1} parent=1 // pred_check_branch
      %26 = sbr.rel (0) target = $region9
    $region8: #{tpu_custom_call.1} parent=1 // pred_region
      %s28 = ssub.s32 128, 128
      %29 = vsyncadd [#allocation6], %s28
      %s31 = sshll.u32 [#allocation5], 4
      %s32 = int_to_ptr.vmem [resolvable:$true] %s31
      %34 = dma.hbm_to_vmem [thread:$0]  %s1, 128, %s32, [#allocation6]
    $region9: #{tpu_custom_call.1} parent=1 // pred_fallthru
      _
    // Predicated region
    $region10: #{tpu_custom_call.1} parent=1 // pred_check
      _
    $region11: #{tpu_custom_call.1} parent=1 // pred_check_branch
      %36 = sbr.rel (0) target = $region13
    $region12: #{tpu_custom_call.1} parent=1 // pred_region
      %s38 = ssub.s32 2048, 2048
      %39 = vsyncadd [#allocation6], %s38
      %s40 = sshll.u32 [#allocation7], 4
      %s41 = int_to_ptr.vmem [resolvable:$true] %s40
      %46 = dma.hbm_to_vmem [thread:$0]  %s2, 2048, %s41, [#allocation6], 256, 256, 16
    $region13: #{tpu_custom_call.1} parent=1 // pred_fallthru
      _
    // Predicated region
    $region14: #{tpu_custom_call.1} parent=1 // pred_check
      _
    $region15: #{tpu_custom_call.1} parent=1 // pred_check_branch
      %48 = sbr.rel (0) target = $region17
    $region16: #{tpu_custom_call.1} parent=1 // pred_region
      _
    $region17: #{tpu_custom_call.1} parent=1 // pred_fallthru
      _
    // Predicated region
    $region18: #{tpu_custom_call.1} parent=1 // pred_check
      _
    $region19: #{tpu_custom_call.1} parent=1 // pred_check_branch
      %50 = sbr.rel (0) target = $region21
    $region20: #{tpu_custom_call.1} parent=1 // pred_region
      %s52 = ssub.s32 4096, 4096
      %53 = vsyncadd [#allocation9], %s52
      %s54 = sshll.u32 [#allocation8], 4
      %s55 = int_to_ptr.vmem [resolvable:$true] %s54
      %60 = dma.hbm_to_vmem [thread:$0]  %s4, 4096, %s55, [#allocation9], 128, 128, 8
    $region21: #{tpu_custom_call.1} parent=1 // pred_fallthru
      _
    // Predicated region
    $region22: #{tpu_custom_call.1} parent=1 // pred_check
      _
    $region23: #{tpu_custom_call.1} parent=1 // pred_check_branch
      %62 = sbr.rel (0) target = $region25
    $region24: #{tpu_custom_call.1} parent=1 // pred_region
      _
    $region25: #{tpu_custom_call.1} parent=1 // pred_fallthru
      _
    // Predicated region
    $region26: #{tpu_custom_call.1} parent=1 // pred_check
      _
    $region27: #{tpu_custom_call.1} parent=1 // pred_check_branch
      %64 = sbr.rel (0) target = $region29
    $region28: #{tpu_custom_call.1} parent=1 // pred_region
      %65 = dma.done [#allocation3], 128
    $region29: #{tpu_custom_call.1} parent=1 // pred_fallthru
      _
    // Predicated region
    $region30: #{tpu_custom_call.1} parent=1 // pred_check
      _
    $region31: #{tpu_custom_call.1} parent=1 // pred_check_branch
      %67 = sbr.rel (0) target = $region33
    $region32: #{tpu_custom_call.1} parent=1 // pred_region
      %68 = dma.done [#allocation6], 128
    $region33: #{tpu_custom_call.1} parent=1 // pred_fallthru
      _
    // Predicated region
    $region34: #{tpu_custom_call.1} parent=1 // pred_check
      _
    $region35: #{tpu_custom_call.1} parent=1 // pred_check_branch
      %70 = sbr.rel (0) target = $region37
    $region36: #{tpu_custom_call.1} parent=1 // pred_region
      %71 = dma.done [#allocation6], 2048
    $region37: #{tpu_custom_call.1} parent=1 // pred_fallthru
      _
    // Predicated region
    $region38: #{tpu_custom_call.1} parent=1 // pred_check
      _
    $region39: #{tpu_custom_call.1} parent=1 // pred_check_branch
      %73 = sbr.rel (0) target = $region41
    $region40: #{tpu_custom_call.1} parent=1 // pred_region
      %74 = dma.done [#allocation9], 4096
    $region41: #{tpu_custom_call.1} parent=1 // pred_fallthru
      _
    %v75 = vld [vmem:[#allocation2] sm:$0xff]
    %v76 = vld [vmem:[#allocation7] sm:$0xff]
    %v77 = vld [vmem:[#allocation7 + $0x8] sm:$0xff]
    %v78 = vld [vmem:[#allocation7 + $0x10] sm:$0xff]
    %v79 = vld [vmem:[#allocation7 + $0x18] sm:$0xff]
    %v80 = vld [vmem:[#allocation7 + $0x20] sm:$0xff]
    %v81 = vld [vmem:[#allocation7 + $0x28] sm:$0xff]
    %v82 = vld [vmem:[#allocation7 + $0x30] sm:$0xff]
    %v83 = vld [vmem:[#allocation7 + $0x38] sm:$0xff]
    %v84 = vld [vmem:[#allocation5] sm:$0xff]
    %v85 = vld [vmem:[#allocation7 + $0x40] sm:$0xff]
    %v86 = vld [vmem:[#allocation7 + $0x48] sm:$0xff]
    %v87 = vld [vmem:[#allocation7 + $0x50] sm:$0xff]
    %v88 = vld [vmem:[#allocation7 + $0x58] sm:$0xff]
    %v89 = vld [vmem:[#allocation7 + $0x60] sm:$0xff]
    %v90 = vld [vmem:[#allocation7 + $0x68] sm:$0xff]
    %v91 = vld [vmem:[#allocation7 + $0x70] sm:$0xff]
    %v92 = vld [vmem:[#allocation7 + $0x78] sm:$0xff]
    %vm93 = vcmask 261120
    %v95 = vsel %vm93, %v84, 0
    %97 = vmatprep.subr.mxu0 %v86
    %98 = vmatpush1.msra.mxu0 %v85
    %99 = vmatprep.subr.mxu0 %v88
    %100 = vmatpush1.msra.mxu0 %v87
    %101 = vmatprep.subr.mxu0 %v90
    %102 = vmatpush1.msra.mxu0 %v89
    %103 = vmatprep.subr.mxu0 %v92
    %104 = vmatpush1.msra.mxu0 %v91
    %105 = vmatprep.subr.mxu0 0.0
    %106 = vmatpush1.msra.mxu0 0.0
    %107 = vmatprep.subr.mxu0 0.0
    %108 = vmatpush1.msra.mxu0 0.0
    %109 = vmatprep.subr.mxu0 0.0
    %110 = vmatpush1.msra.mxu0 0.0
    %111 = vmatprep.subr.mxu0 0.0
    %112 = vmatpush1.msra.mxu0 0.0
    %113 = vmatprep.subr.mxu0 0.0
    %114 = vmatpush1.msra.mxu0 0.0
    %115 = vmatprep.subr.mxu0 0.0
    %116 = vmatpush1.msra.mxu0 0.0
    %117 = vmatprep.subr.mxu0 0.0
    %118 = vmatpush1.msra.mxu0 0.0
    %119 = vmatprep.subr.mxu0 0.0
    %120 = vmatpush1.msra.mxu0 0.0
    %121 = vmatprep.subr.mxu0 0.0
    %122 = vmatpush1.msra.mxu0 0.0
    %123 = vmatprep.subr.mxu0 0.0
    %124 = vmatpush1.msra.mxu0 0.0
    %125 = vmatprep.subr.mxu0 0.0
    %126 = vmatpush1.msra.mxu0 0.0
    %127 = vmatprep.subr.mxu0 0.0
    %128 = vmatpush1.msra.mxu0 0.0
    %129 = vmatprep.subr.mxu0 0.0
    %130 = vmatpush1.msra.mxu0 0.0
    %131 = vmatprep.subr.mxu0 0.0
    %132 = vmatpush1.msra.mxu0 0.0
    %133 = vmatprep.subr.mxu0 0.0
    %134 = vmatpush1.msra.mxu0 0.0
    %135 = vmatprep.subr.mxu0 0.0
    %136 = vmatpush1.msra.mxu0 0.0
    %137 = vmatprep.subr.mxu0 0.0
    %138 = vmatpush1.msra.mxu0 0.0
    %139 = vmatprep.subr.mxu0 0.0
    %140 = vmatpush1.msra.mxu0 0.0
    %141 = vmatprep.subr.mxu0 0.0
    %142 = vmatpush1.msra.mxu0 0.0
    %143 = vmatprep.subr.mxu0 0.0
    %144 = vmatpush1.msra.mxu0 0.0
    %145 = vmatprep.subr.mxu0 0.0
    %146 = vmatpush1.msra.mxu0 0.0
    %147 = vmatprep.subr.mxu0 0.0
    %148 = vmatpush1.msra.mxu0 0.0
    %149 = vmatprep.subr.mxu0 0.0
    %150 = vmatpush1.msra.mxu0 0.0
    %151 = vmatprep.subr.mxu0 0.0
    %152 = vmatpush1.msra.mxu0 0.0
    %153 = vmatprep.subr.mxu0 0.0
    %154 = vmatpush1.msra.mxu0 0.0
    %155 = vmatprep.subr.mxu0 0.0
    %156 = vmatpush1.msra.mxu0 0.0
    %157 = vmatprep.subr.mxu0 0.0
    %158 = vmatpush1.msra.mxu0 0.0
    %159 = vmatprep.subr.mxu0 0.0
    %160 = vmatpush1.msra.mxu0 0.0
    %161 = vmatprep.mubr.f32.mxu0 0.0
    %162 = vmatmul.mubr.f32.gmra.mrb[0].mxu0 %v95
    %v163 = vpop.f32.mrb[0].mxu0
    %v164 = vadd.f32 0.0, %v163
    %v165 = vpop.f32.mrb[0].mxu0
    %v166 = vadd.f32 0.0, %v165
    %167 = vdwg.mxu0
    %v169 = vsel %vm93, %v75, 0
    %171 = vmatprep.subr.mxu0 %v77
    %172 = vmatpush1.msra.mxu0 %v76
    %173 = vmatprep.subr.mxu0 %v79
    %174 = vmatpush1.msra.mxu0 %v78
    %175 = vmatprep.subr.mxu0 %v81
    %176 = vmatpush1.msra.mxu0 %v80
    %177 = vmatprep.subr.mxu0 %v83
    %178 = vmatpush1.msra.mxu0 %v82
    %179 = vmatprep.subr.mxu0 0.0
    %180 = vmatpush1.msra.mxu0 0.0
    %181 = vmatprep.subr.mxu0 0.0
    %182 = vmatpush1.msra.mxu0 0.0
    %183 = vmatprep.subr.mxu0 0.0
    %184 = vmatpush1.msra.mxu0 0.0
    %185 = vmatprep.subr.mxu0 0.0
    %186 = vmatpush1.msra.mxu0 0.0
    %187 = vmatprep.subr.mxu0 0.0
    %188 = vmatpush1.msra.mxu0 0.0
    %189 = vmatprep.subr.mxu0 0.0
    %190 = vmatpush1.msra.mxu0 0.0
    %191 = vmatprep.subr.mxu0 0.0
    %192 = vmatpush1.msra.mxu0 0.0
    %193 = vmatprep.subr.mxu0 0.0
    %194 = vmatpush1.msra.mxu0 0.0
    %195 = vmatprep.subr.mxu0 0.0
    %196 = vmatpush1.msra.mxu0 0.0
    %197 = vmatprep.subr.mxu0 0.0
    %198 = vmatpush1.msra.mxu0 0.0
    %199 = vmatprep.subr.mxu0 0.0
    %200 = vmatpush1.msra.mxu0 0.0
    %201 = vmatprep.subr.mxu0 0.0
    %202 = vmatpush1.msra.mxu0 0.0
    %203 = vmatprep.subr.mxu0 0.0
    %204 = vmatpush1.msra.mxu0 0.0
    %205 = vmatprep.subr.mxu0 0.0
    %206 = vmatpush1.msra.mxu0 0.0
    %207 = vmatprep.subr.mxu0 0.0
    %208 = vmatpush1.msra.mxu0 0.0
    %209 = vmatprep.subr.mxu0 0.0
    %210 = vmatpush1.msra.mxu0 0.0
    %211 = vmatprep.subr.mxu0 0.0
    %212 = vmatpush1.msra.mxu0 0.0
    %213 = vmatprep.subr.mxu0 0.0
    %214 = vmatpush1.msra.mxu0 0.0
    %215 = vmatprep.subr.mxu0 0.0
    %216 = vmatpush1.msra.mxu0 0.0
    %217 = vmatprep.subr.mxu0 0.0
    %218 = vmatpush1.msra.mxu0 0.0
    %219 = vmatprep.subr.mxu0 0.0
    %220 = vmatpush1.msra.mxu0 0.0
    %221 = vmatprep.subr.mxu0 0.0
    %222 = vmatpush1.msra.mxu0 0.0
    %223 = vmatprep.subr.mxu0 0.0
    %224 = vmatpush1.msra.mxu0 0.0
    %225 = vmatprep.subr.mxu0 0.0
    %226 = vmatpush1.msra.mxu0 0.0
    %227 = vmatprep.subr.mxu0 0.0
    %228 = vmatpush1.msra.mxu0 0.0
    %229 = vmatprep.subr.mxu0 0.0
    %230 = vmatpush1.msra.mxu0 0.0
    %231 = vmatprep.subr.mxu0 0.0
    %232 = vmatpush1.msra.mxu0 0.0
    %233 = vmatprep.subr.mxu0 0.0
    %234 = vmatpush1.msra.mxu0 0.0
    %235 = vmatprep.mubr.f32.mxu0 0.0
    %236 = vmatmul.mubr.f32.gmra.mrb[0].mxu0 %v169
    %v237 = vpop.f32.mrb[0].mxu0
    %v238 = vadd.f32 %v164, %v237
    %v239 = vpop.f32.mrb[0].mxu0
    %v240 = vadd.f32 %v166, %v239
    %241 = vdwg.mxu0
    %v242 = vld [vmem:[%s3] sm:$0x3]
    %v244 = vlaneseq
    %v245 = vshrl.u32 %v244, 7
    %v246 = vsub.s32 0, %v245
    %v247 = vrot.slane %v242, %v246
    %v248 = vlaneseq
    %v249 = vshrl.u32 %v248, 7
    %v250 = vsub.s32 1, %v249
    %v251 = vrot.slane %v242, %v250
    %v254 = vadd.f32 %v238, %v247
    %v255 = vadd.f32 %v240, %v251
    %v256 = vmax.f32 %v254, 0.0
    %v257 = vmax.f32 %v255, 0.0
    %v258 = vld [vmem:[#allocation8] sm:$0xff]
    %v259 = vld [vmem:[#allocation8 + $0x8] sm:$0xff]
    %v260 = vld [vmem:[#allocation8 + $0x10] sm:$0xff]
    %v261 = vld [vmem:[#allocation8 + $0x18] sm:$0xff]
    %v262 = vld [vmem:[#allocation8 + $0x20] sm:$0xff]
    %v263 = vld [vmem:[#allocation8 + $0x28] sm:$0xff]
    %v264 = vld [vmem:[#allocation8 + $0x30] sm:$0xff]
    %v265 = vld [vmem:[#allocation8 + $0x38] sm:$0xff]
    %v266 = vld [vmem:[#allocation8 + $0x40] sm:$0xff]
    %v267 = vld [vmem:[#allocation8 + $0x48] sm:$0xff]
    %v268 = vld [vmem:[#allocation8 + $0x50] sm:$0xff]
    %v269 = vld [vmem:[#allocation8 + $0x58] sm:$0xff]
    %v270 = vld [vmem:[#allocation8 + $0x60] sm:$0xff]
    %v271 = vld [vmem:[#allocation8 + $0x68] sm:$0xff]
    %v272 = vld [vmem:[#allocation8 + $0x70] sm:$0xff]
    %v273 = vld [vmem:[#allocation8 + $0x78] sm:$0xff]
    %v274 = vld [vmem:[#allocation8 + $0x80] sm:$0xff]
    %v275 = vld [vmem:[#allocation8 + $0x88] sm:$0xff]
    %v276 = vld [vmem:[#allocation8 + $0x90] sm:$0xff]
    %v277 = vld [vmem:[#allocation8 + $0x98] sm:$0xff]
    %v278 = vld [vmem:[#allocation8 + $0xa0] sm:$0xff]
    %v279 = vld [vmem:[#allocation8 + $0xa8] sm:$0xff]
    %v280 = vld [vmem:[#allocation8 + $0xb0] sm:$0xff]
    %v281 = vld [vmem:[#allocation8 + $0xb8] sm:$0xff]
    %v282 = vld [vmem:[#allocation8 + $0xc0] sm:$0xff]
    %v283 = vld [vmem:[#allocation8 + $0xc8] sm:$0xff]
    %v284 = vld [vmem:[#allocation8 + $0xd0] sm:$0xff]
    %v285 = vld [vmem:[#allocation8 + $0xd8] sm:$0xff]
    %v286 = vld [vmem:[#allocation8 + $0xe0] sm:$0xff]
    %v287 = vld [vmem:[#allocation8 + $0xe8] sm:$0xff]
    %v288 = vld [vmem:[#allocation8 + $0xf0] sm:$0xff]
    %v289 = vld [vmem:[#allocation8 + $0xf8] sm:$0xff]
    %v290 = vld [vmem:[%s5] sm:$0x1]
    %v292 = vlaneseq
    %v293 = vshrl.u32 %v292, 7
    %v294 = vsub.s32 0, %v293
    %v295 = vrot.slane %v290, %v294
    %297 = vmatprep.subr.mxu0 0.0
    %298 = vmatpush1.msra.mxu0 %v258
    %299 = vmatprep.subr.mxu0 0.0
    %300 = vmatpush1.msra.mxu0 %v259
    %301 = vmatprep.subr.mxu0 0.0
    %302 = vmatpush1.msra.mxu0 %v260
    %303 = vmatprep.subr.mxu0 0.0
    %304 = vmatpush1.msra.mxu0 %v261
    %305 = vmatprep.subr.mxu0 0.0
    %306 = vmatpush1.msra.mxu0 %v262
    %307 = vmatprep.subr.mxu0 0.0
    %308 = vmatpush1.msra.mxu0 %v263
    %309 = vmatprep.subr.mxu0 0.0
    %310 = vmatpush1.msra.mxu0 %v264
    %311 = vmatprep.subr.mxu0 0.0
    %312 = vmatpush1.msra.mxu0 %v265
    %313 = vmatprep.subr.mxu0 0.0
    %314 = vmatpush1.msra.mxu0 %v266
    %315 = vmatprep.subr.mxu0 0.0
    %316 = vmatpush1.msra.mxu0 %v267
    %317 = vmatprep.subr.mxu0 0.0
    %318 = vmatpush1.msra.mxu0 %v268
    %319 = vmatprep.subr.mxu0 0.0
    %320 = vmatpush1.msra.mxu0 %v269
    %321 = vmatprep.subr.mxu0 0.0
    %322 = vmatpush1.msra.mxu0 %v270
    %323 = vmatprep.subr.mxu0 0.0
    %324 = vmatpush1.msra.mxu0 %v271
    %325 = vmatprep.subr.mxu0 0.0
    %326 = vmatpush1.msra.mxu0 %v272
    %327 = vmatprep.subr.mxu0 0.0
    %328 = vmatpush1.msra.mxu0 %v273
    %329 = vmatprep.subr.mxu0 0.0
    %330 = vmatpush1.msra.mxu0 %v274
    %331 = vmatprep.subr.mxu0 0.0
    %332 = vmatpush1.msra.mxu0 %v275
    %333 = vmatprep.subr.mxu0 0.0
    %334 = vmatpush1.msra.mxu0 %v276
    %335 = vmatprep.subr.mxu0 0.0
    %336 = vmatpush1.msra.mxu0 %v277
    %337 = vmatprep.subr.mxu0 0.0
    %338 = vmatpush1.msra.mxu0 %v278
    %339 = vmatprep.subr.mxu0 0.0
    %340 = vmatpush1.msra.mxu0 %v279
    %341 = vmatprep.subr.mxu0 0.0
    %342 = vmatpush1.msra.mxu0 %v280
    %343 = vmatprep.subr.mxu0 0.0
    %344 = vmatpush1.msra.mxu0 %v281
    %345 = vmatprep.subr.mxu0 0.0
    %346 = vmatpush1.msra.mxu0 %v282
    %347 = vmatprep.subr.mxu0 0.0
    %348 = vmatpush1.msra.mxu0 %v283
    %349 = vmatprep.subr.mxu0 0.0
    %350 = vmatpush1.msra.mxu0 %v284
    %351 = vmatprep.subr.mxu0 0.0
    %352 = vmatpush1.msra.mxu0 %v285
    %353 = vmatprep.subr.mxu0 0.0
    %354 = vmatpush1.msra.mxu0 %v286
    %355 = vmatprep.subr.mxu0 0.0
    %356 = vmatpush1.msra.mxu0 %v287
    %357 = vmatprep.subr.mxu0 0.0
    %358 = vmatpush1.msra.mxu0 %v288
    %359 = vmatprep.subr.mxu0 0.0
    %360 = vmatpush1.msra.mxu0 %v289
    %361 = vmatprep.mubr.f32.mxu0 %v257
    %362 = vmatmul.mubr.f32.gmra.mrb[0].mxu0 %v256
    %v363 = vpop.f32.mrb[0].mxu0
    %v364 = vadd.f32 %v295, %v363
    %v365 = vpop.f32.mrb[0].mxu0
    %366 = vdwg.mxu0
    %367 = vst [vmem:[#allocation10] sm:$0xff] %v364
    // Predicated region
    $region42: #{tpu_custom_call.1} parent=1 // pred_check
      _
    $region43: #{tpu_custom_call.1} parent=1 // pred_check_branch
      %369 = sbr.rel (0) target = $region45
    $region44: #{tpu_custom_call.1} parent=1 // pred_region
      %s371 = ssub.s32 128, 128
      %372 = vsyncadd [#allocation4], %s371
      %s374 = sshll.u32 [#allocation10], 4
      %s375 = int_to_ptr.vmem [resolvable:$true] %s374
      %377 = dma.vmem_to_hbm [thread:$0]  %s375, 128, %s6, [#allocation4]
    $region45: #{tpu_custom_call.1} parent=1 // pred_fallthru
      _
    // Predicated region
    $region46: #{tpu_custom_call.1} parent=1 // pred_check
      _
    $region47: #{tpu_custom_call.1} parent=1 // pred_check_branch
      %379 = sbr.rel (0) target = $region49
    $region48: #{tpu_custom_call.1} parent=1 // pred_region
      %380 = dma.done [#allocation4], 128
    $region49: #{tpu_custom_call.1} parent=1 // pred_fallthru
      _
    %381 = vsyncpa [#allocation3], 1
    %382 = vsyncpa [#allocation6], 1
    %383 = vsyncpa [#allocation9], 1
    %384 = vsyncpa [#allocation4], 1

</llo_original>
